<compile_context>
chip_gen: v7x
topology: tpu7x:2x2x1
jax: 0.10.0
libtpu: 0.0.40
codegen_flags: <defaults>
</compile_context>

<pallas_src>
import jax
import jax.numpy as jnp
from jax import lax
from jax.experimental import pallas as pl
from jax.experimental.pallas import tpu as pltpu


def lstm_fc_kernel(gates_ref, whh_ref, wfc_ref, bfc_ref, out_ref, h_sc, c_sc):
    """One (batch-tile, time-chunk) grid step of the LSTM recurrence.

    gates_ref : (t_chunk, tb, 4H) bf16  precomputed x@W_ih + (b_ih+b_hh), time-major
    whh_ref   : (H, 4H)           f32   hidden->gates weight (transposed torch weight_hh_l0)
    wfc_ref   : (H, Cp)           f32   fc1 weight transposed, zero-padded to Cp lanes
    bfc_ref   : (1, Cp)           f32   fc1 bias, zero-padded
    out_ref   : (tb, Cp)          f32   lane-dense padded logits (written at last chunk)
    h_sc,c_sc : (tb, H)           f32   hidden / cell state carried across time chunks
    """
    ti = pl.program_id(1)
    nt = pl.num_programs(1)
    t_chunk = gates_ref.shape[0]
    H = whh_ref.shape[0]

    @pl.when(ti == 0)
    def _():
        h_sc[...] = jnp.zeros_like(h_sc)
        c_sc[...] = jnp.zeros_like(c_sc)

    def step(t, carry):
        h, c = carry
        # Only the recurrent matmul sits on the serial path (f32 MXU, f32 acc).
        gates = gates_ref[t].astype(jnp.float32) + jnp.dot(
            h, whh_ref[...], preferred_element_type=jnp.float32)   # (tb, 4H)
        # Per-gate nonlinearities, torch gate order [i, f, g, o].
        i_g = jax.nn.sigmoid(gates[:, 0 * H:1 * H])
        f_g = jax.nn.sigmoid(gates[:, 1 * H:2 * H])
        g_g = jnp.tanh(gates[:, 2 * H:3 * H])
        o_g = jax.nn.sigmoid(gates[:, 3 * H:4 * H])
        c_new = f_g * c + i_g * g_g
        h_new = o_g * jnp.tanh(c_new)
        return (h_new, c_new)

    h_fin, c_fin = lax.fori_loop(0, t_chunk, step, (h_sc[...], c_sc[...]),
                                 unroll=True)
    h_sc[...] = h_fin
    c_sc[...] = c_fin

    # fc1 on the last timestep's hidden state (out[:, -1, :] in torch).
    @pl.when(ti == nt - 1)
    def _():
        out_ref[...] = (jnp.dot(h_fin, wfc_ref[...],
                                preferred_element_type=jnp.float32)
                        + bfc_ref[...])


def _choose_time_chunk(T):
    t_chunk = 1
    for c in (8, 4, 2, 1):
        if T % c == 0:
            t_chunk = c
            break
    # Prefer >= 2 chunks so the gates DMA overlaps the recurrence.
    if T // t_chunk == 1 and t_chunk > 1:
        t_chunk //= 2
    return t_chunk


def isl_mediapipe_lstm_forward(x, wih_t, whh_t, b, wfc_t, bfc):
    """x: (B, T, D) batch-first, float32. Returns logits (B, C)."""
    B, T, D = x.shape
    H = whh_t.shape[0]
    C = wfc_t.shape[1]
    C_pad = ((C + 127) // 128) * 128

    # Sublane-friendly batch padding (multiple of 8); padded rows see zero input.
    B_pad = ((B + 7) // 8) * 8
    if B_pad != B:
        x = jnp.concatenate(
            [x, jnp.zeros((B_pad - B, T, D), x.dtype)], axis=0)

    t_chunk = _choose_time_chunk(T)
    nt = T // t_chunk
    tb = B_pad                      # one batch tile at toy scale
    nb = B_pad // tb                # TODO(synk): tb=128..256 at production batch

    # Hoisted input projection for all timesteps (one big matmul), bias folded
    # in once, emitted directly in time-major layout.  f32 accumulate, bf16
    # storage to halve HBM traffic into the kernel.
    gates_x = (jnp.einsum('btd,dg->tbg', x, wih_t,
                          preferred_element_type=jnp.float32)
               + b.reshape(1, 1, 4 * H)).astype(jnp.bfloat16)

    whh_f = whh_t.astype(jnp.float32)
    wfc_pad = jnp.zeros((H, C_pad), jnp.float32).at[:, :C].set(
        wfc_t.astype(jnp.float32))
    bfc_pad = jnp.zeros((1, C_pad), jnp.float32).at[:, :C].set(bfc)

    grid_spec = pltpu.PrefetchScalarGridSpec(
        num_scalar_prefetch=0,
        grid=(nb, nt),
        in_specs=[
            pl.BlockSpec((t_chunk, tb, 4 * H), lambda bi, ti: (ti, bi, 0)),
            pl.BlockSpec((H, 4 * H), lambda bi, ti: (0, 0)),
            pl.BlockSpec((H, C_pad), lambda bi, ti: (0, 0)),
            pl.BlockSpec((1, C_pad), lambda bi, ti: (0, 0)),
        ],
        out_specs=pl.BlockSpec((tb, C_pad), lambda bi, ti: (bi, 0)),
        scratch_shapes=[
            pltpu.VMEM((tb, H), jnp.float32),   # h
            pltpu.VMEM((tb, H), jnp.float32),   # c
        ],
    )

    out_pad = pl.pallas_call(
        lstm_fc_kernel,
        out_shape=jax.ShapeDtypeStruct((B_pad, C_pad), jnp.float32),
        grid_spec=grid_spec,
        compiler_params=pltpu.CompilerParams(
            dimension_semantics=("parallel", "arbitrary"),
            vmem_limit_bytes=48 * 1024 * 1024),
    )(gates_x, whh_f, wfc_pad, bfc_pad)

    return out_pad[:B, :C]


def reference_forward(x, wih_t, whh_t, b, wfc_t, bfc):
    """Pure-JAX f32 reference mirroring torch.nn.LSTM + Linear."""
    B, T, _ = x.shape
    H = whh_t.shape[0]
    h = jnp.zeros((B, H), jnp.float32)
    c = jnp.zeros((B, H), jnp.float32)
    for t in range(T):
        g = x[:, t, :] @ wih_t + h @ whh_t + b
        i = jax.nn.sigmoid(g[:, 0 * H:1 * H])
        f = jax.nn.sigmoid(g[:, 1 * H:2 * H])
        gg = jnp.tanh(g[:, 2 * H:3 * H])
        o = jax.nn.sigmoid(g[:, 3 * H:4 * H])
        c = f * c + i * gg
        h = o * jnp.tanh(c)
    return h @ wfc_t + bfc


if __name__ == "__main__":
    # Small shapes consistent with the module's forward:
    # input feature size is fixed at 258 by the module; shrink hidden/classes.
    B, T, D = 2, 8, 258
    H = 32            # lstm_hidden_size (small)
    C = 16            # num_classes (small)

    key = jax.random.PRNGKey(0)
    ks = jax.random.split(key, 7)
    scale = 1.0 / jnp.sqrt(jnp.float32(H))   # torch nn.LSTM / Linear init range

    x = jax.random.normal(ks[0], (B, T, D), jnp.float32)
    # Weights stored already transposed: (in_features, out_features).
    wih_t = jax.random.uniform(ks[1], (D, 4 * H), jnp.float32, -scale, scale)
    whh_t = jax.random.uniform(ks[2], (H, 4 * H), jnp.float32, -scale, scale)
    b_ih = jax.random.uniform(ks[3], (4 * H,), jnp.float32, -scale, scale)
    b_hh = jax.random.uniform(ks[4], (4 * H,), jnp.float32, -scale, scale)
    b = b_ih + b_hh
    wfc_t = jax.random.uniform(ks[5], (H, C), jnp.float32, -scale, scale)
    bfc = jax.random.uniform(ks[6], (C,), jnp.float32, -scale, scale)

    out = isl_mediapipe_lstm_forward(x, wih_t, whh_t, b, wfc_t, bfc)
    out = jax.block_until_ready(out)

    ref = reference_forward(x, wih_t, whh_t, b, wfc_t, bfc)
    assert out.shape == (B, C)
    # bf16 storage of the pre-activation gates vs f32 reference -> loose tol.
    assert jnp.allclose(out, ref, rtol=2e-2, atol=2e-2), "mismatch vs reference"

    print("KERNEL_OK")
</pallas_src>

<mosaic_0001>
module attributes {stable_mosaic.version = 11 : i64} {
  func.func @lstm_fc_kernel(%arg0: i32, %arg1: i32, %arg2: memref<4x8x128xbf16, #tpu.memory_space<vmem>>, %arg3: memref<32x128xf32, #tpu.memory_space<vmem>>, %arg4: memref<32x128xf32, #tpu.memory_space<vmem>>, %arg5: memref<1x128xf32, #tpu.memory_space<vmem>>, %arg6: memref<8x128xf32, #tpu.memory_space<vmem>>, %arg7: memref<8x32xf32, #tpu.memory_space<vmem>>, %arg8: memref<8x32xf32, #tpu.memory_space<vmem>>) attributes {dimension_semantics = [#tpu.dimension_semantics<parallel>, #tpu.dimension_semantics<arbitrary>], iteration_bounds = array<i64: 1, 2>, scalar_prefetch = 0 : i64, scratch_operands = 2 : i64, tpu.core_type = #tpu.core_type<tc>, window_params = [{transform_indices = @transform_0, window_bounds = array<i64: 4, 8, 128>}, {pipeline_mode = #tpu.pipeline_mode<synchronous>, transform_indices = @transform_1, window_bounds = array<i64: 32, 128>}, {pipeline_mode = #tpu.pipeline_mode<synchronous>, transform_indices = @transform_2, window_bounds = array<i64: 32, 128>}, {pipeline_mode = #tpu.pipeline_mode<synchronous>, transform_indices = @transform_3, window_bounds = array<i64: 1, 128>}, {transform_indices = @transform_4, window_bounds = array<i64: 8, 128>}]} {
    %c0_i32 = arith.constant 0 : i32
    %0 = arith.cmpi eq, %arg1, %c0_i32 : i32
    %1 = arith.extui %0 : i1 to i32
    %c0_i32_0 = arith.constant 0 : i32
    %2 = arith.cmpi ne, %1, %c0_i32_0 : i32
    scf.if %2 {
      %cst_42 = arith.constant 0.000000e+00 : f32
      %138 = vector.broadcast %cst_42 : f32 to vector<8x32xf32>
      %c0_43 = arith.constant 0 : index
      %c0_44 = arith.constant 0 : index
      %139 = vector.load %arg7[%c0_43, %c0_44] : memref<8x32xf32, #tpu.memory_space<vmem>>, vector<8x32xf32>
      tpu.vector_store %arg7[%c0_43, %c0_44], %138 {strides = array<i32>} : memref<8x32xf32, #tpu.memory_space<vmem>>, vector<8x32xf32>,
      %cst_45 = arith.constant 0.000000e+00 : f32
      %140 = vector.broadcast %cst_45 : f32 to vector<8x32xf32>
      %c0_46 = arith.constant 0 : index
      %c0_47 = arith.constant 0 : index
      %141 = vector.load %arg8[%c0_46, %c0_47] : memref<8x32xf32, #tpu.memory_space<vmem>>, vector<8x32xf32>
      tpu.vector_store %arg8[%c0_46, %c0_47], %140 {strides = array<i32>} : memref<8x32xf32, #tpu.memory_space<vmem>>, vector<8x32xf32>,
    } else {
    }
    %c0 = arith.constant 0 : index
    %c0_1 = arith.constant 0 : index
    %3 = vector.load %arg7[%c0, %c0_1] : memref<8x32xf32, #tpu.memory_space<vmem>>, vector<8x32xf32>
    %c0_2 = arith.constant 0 : index
    %c0_3 = arith.constant 0 : index
    %4 = vector.load %arg8[%c0_2, %c0_3] : memref<8x32xf32, #tpu.memory_space<vmem>>, vector<8x32xf32>
    %c0_i32_4 = arith.constant 0 : i32
    %5 = arith.index_cast %c0_i32_4 : i32 to index
    %c0_5 = arith.constant 0 : index
    %c0_6 = arith.constant 0 : index
    %6 = vector.load %arg2[%5, %c0_5, %c0_6] : memref<4x8x128xbf16, #tpu.memory_space<vmem>>, vector<1x8x128xbf16>
    %7 = vector.shape_cast %6 : vector<1x8x128xbf16> to vector<8x128xbf16>
    %8 = arith.extf %7 : vector<8x128xbf16> to vector<8x128xf32>
    %c0_7 = arith.constant 0 : index
    %c0_8 = arith.constant 0 : index
    %9 = vector.load %arg3[%c0_7, %c0_8] : memref<32x128xf32, #tpu.memory_space<vmem>>, vector<32x128xf32>
    %cst = arith.constant dense<0.000000e+00> : vector<8x128xf32>
    %10 = tpu.matmul %3, %9, %cst {dimension_numbers = #tpu.dot_dimension_numbers<[1], [0], [0], [1], [0, 0, 1, 1], [], []>} : vector<8x32xf32>, vector<32x128xf32>, vector<8x128xf32> -> vector<8x128xf32>
    %11 = arith.addf %8, %10 : vector<8x128xf32>
    %12 = vector.extract_strided_slice %11 {offsets = [0, 0], sizes = [8, 32], strides = [1, 1]} : vector<8x128xf32> to vector<8x32xf32>
    %13 = arith.negf %12 : vector<8x32xf32>
    %14 = math.exp %13 : vector<8x32xf32>
    %cst_9 = arith.constant 1.000000e+00 : f32
    %15 = vector.broadcast %cst_9 : f32 to vector<8x32xf32>
    %16 = arith.addf %15, %14 : vector<8x32xf32>
    %17 = arith.divf %15, %16 : vector<8x32xf32>
    %18 = vector.extract_strided_slice %11 {offsets = [0, 32], sizes = [8, 32], strides = [1, 1]} : vector<8x128xf32> to vector<8x32xf32>
    %19 = arith.negf %18 : vector<8x32xf32>
    %20 = math.exp %19 : vector<8x32xf32>
    %cst_10 = arith.constant 1.000000e+00 : f32
    %21 = vector.broadcast %cst_10 : f32 to vector<8x32xf32>
    %22 = arith.addf %21, %20 : vector<8x32xf32>
    %23 = arith.divf %21, %22 : vector<8x32xf32>
    %24 = vector.extract_strided_slice %11 {offsets = [0, 64], sizes = [8, 32], strides = [1, 1]} : vector<8x128xf32> to vector<8x32xf32>
    %25 = math.tanh %24 : vector<8x32xf32>
    %26 = vector.extract_strided_slice %11 {offsets = [0, 96], sizes = [8, 32], strides = [1, 1]} : vector<8x128xf32> to vector<8x32xf32>
    %27 = arith.negf %26 : vector<8x32xf32>
    %28 = math.exp %27 : vector<8x32xf32>
    %cst_11 = arith.constant 1.000000e+00 : f32
    %29 = vector.broadcast %cst_11 : f32 to vector<8x32xf32>
    %30 = arith.addf %29, %28 : vector<8x32xf32>
    %31 = arith.divf %29, %30 : vector<8x32xf32>
    %32 = arith.mulf %23, %4 : vector<8x32xf32>
    %33 = arith.mulf %17, %25 : vector<8x32xf32>
    %34 = arith.addf %32, %33 : vector<8x32xf32>
    %35 = math.tanh %34 : vector<8x32xf32>
    %36 = arith.mulf %31, %35 : vector<8x32xf32>
    %c1_i32 = arith.constant 1 : i32
    %37 = arith.index_cast %c1_i32 : i32 to index
    %c0_12 = arith.constant 0 : index
    %c0_13 = arith.constant 0 : index
    %38 = vector.load %arg2[%37, %c0_12, %c0_13] : memref<4x8x128xbf16, #tpu.memory_space<vmem>>, vector<1x8x128xbf16>
    %39 = vector.shape_cast %38 : vector<1x8x128xbf16> to vector<8x128xbf16>
    %40 = arith.extf %39 : vector<8x128xbf16> to vector<8x128xf32>
    %c0_14 = arith.constant 0 : index
    %c0_15 = arith.constant 0 : index
    %41 = vector.load %arg3[%c0_14, %c0_15] : memref<32x128xf32, #tpu.memory_space<vmem>>, vector<32x128xf32>
    %cst_16 = arith.constant dense<0.000000e+00> : vector<8x128xf32>
    %42 = tpu.matmul %36, %41, %cst_16 {dimension_numbers = #tpu.dot_dimension_numbers<[1], [0], [0], [1], [0, 0, 1, 1], [], []>} : vector<8x32xf32>, vector<32x128xf32>, vector<8x128xf32> -> vector<8x128xf32>
    %43 = arith.addf %40, %42 : vector<8x128xf32>
    %44 = vector.extract_strided_slice %43 {offsets = [0, 0], sizes = [8, 32], strides = [1, 1]} : vector<8x128xf32> to vector<8x32xf32>
    %45 = arith.negf %44 : vector<8x32xf32>
    %46 = math.exp %45 : vector<8x32xf32>
    %cst_17 = arith.constant 1.000000e+00 : f32
    %47 = vector.broadcast %cst_17 : f32 to vector<8x32xf32>
    %48 = arith.addf %47, %46 : vector<8x32xf32>
    %49 = arith.divf %47, %48 : vector<8x32xf32>
    %50 = vector.extract_strided_slice %43 {offsets = [0, 32], sizes = [8, 32], strides = [1, 1]} : vector<8x128xf32> to vector<8x32xf32>
    %51 = arith.negf %50 : vector<8x32xf32>
    %52 = math.exp %51 : vector<8x32xf32>
    %cst_18 = arith.constant 1.000000e+00 : f32
    %53 = vector.broadcast %cst_18 : f32 to vector<8x32xf32>
    %54 = arith.addf %53, %52 : vector<8x32xf32>
    %55 = arith.divf %53, %54 : vector<8x32xf32>
    %56 = vector.extract_strided_slice %43 {offsets = [0, 64], sizes = [8, 32], strides = [1, 1]} : vector<8x128xf32> to vector<8x32xf32>
    %57 = math.tanh %56 : vector<8x32xf32>
    %58 = vector.extract_strided_slice %43 {offsets = [0, 96], sizes = [8, 32], strides = [1, 1]} : vector<8x128xf32> to vector<8x32xf32>
    %59 = arith.negf %58 : vector<8x32xf32>
    %60 = math.exp %59 : vector<8x32xf32>
    %cst_19 = arith.constant 1.000000e+00 : f32
    %61 = vector.broadcast %cst_19 : f32 to vector<8x32xf32>
    %62 = arith.addf %61, %60 : vector<8x32xf32>
    %63 = arith.divf %61, %62 : vector<8x32xf32>
    %64 = arith.mulf %55, %34 : vector<8x32xf32>
    %65 = arith.mulf %49, %57 : vector<8x32xf32>
    %66 = arith.addf %64, %65 : vector<8x32xf32>
    %67 = math.tanh %66 : vector<8x32xf32>
    %68 = arith.mulf %63, %67 : vector<8x32xf32>
    %c2_i32 = arith.constant 2 : i32
    %69 = arith.index_cast %c2_i32 : i32 to index
    %c0_20 = arith.constant 0 : index
    %c0_21 = arith.constant 0 : index
    %70 = vector.load %arg2[%69, %c0_20, %c0_21] : memref<4x8x128xbf16, #tpu.memory_space<vmem>>, vector<1x8x128xbf16>
    %71 = vector.shape_cast %70 : vector<1x8x128xbf16> to vector<8x128xbf16>
    %72 = arith.extf %71 : vector<8x128xbf16> to vector<8x128xf32>
    %c0_22 = arith.constant 0 : index
    %c0_23 = arith.constant 0 : index
    %73 = vector.load %arg3[%c0_22, %c0_23] : memref<32x128xf32, #tpu.memory_space<vmem>>, vector<32x128xf32>
    %cst_24 = arith.constant dense<0.000000e+00> : vector<8x128xf32>
    %74 = tpu.matmul %68, %73, %cst_24 {dimension_numbers = #tpu.dot_dimension_numbers<[1], [0], [0], [1], [0, 0, 1, 1], [], []>} : vector<8x32xf32>, vector<32x128xf32>, vector<8x128xf32> -> vector<8x128xf32>
    %75 = arith.addf %72, %74 : vector<8x128xf32>
    %76 = vector.extract_strided_slice %75 {offsets = [0, 0], sizes = [8, 32], strides = [1, 1]} : vector<8x128xf32> to vector<8x32xf32>
    %77 = arith.negf %76 : vector<8x32xf32>
    %78 = math.exp %77 : vector<8x32xf32>
    %cst_25 = arith.constant 1.000000e+00 : f32
    %79 = vector.broadcast %cst_25 : f32 to vector<8x32xf32>
    %80 = arith.addf %79, %78 : vector<8x32xf32>
    %81 = arith.divf %79, %80 : vector<8x32xf32>
    %82 = vector.extract_strided_slice %75 {offsets = [0, 32], sizes = [8, 32], strides = [1, 1]} : vector<8x128xf32> to vector<8x32xf32>
    %83 = arith.negf %82 : vector<8x32xf32>
    %84 = math.exp %83 : vector<8x32xf32>
    %cst_26 = arith.constant 1.000000e+00 : f32
    %85 = vector.broadcast %cst_26 : f32 to vector<8x32xf32>
    %86 = arith.addf %85, %84 : vector<8x32xf32>
    %87 = arith.divf %85, %86 : vector<8x32xf32>
    %88 = vector.extract_strided_slice %75 {offsets = [0, 64], sizes = [8, 32], strides = [1, 1]} : vector<8x128xf32> to vector<8x32xf32>
    %89 = math.tanh %88 : vector<8x32xf32>
    %90 = vector.extract_strided_slice %75 {offsets = [0, 96], sizes = [8, 32], strides = [1, 1]} : vector<8x128xf32> to vector<8x32xf32>
    %91 = arith.negf %90 : vector<8x32xf32>
    %92 = math.exp %91 : vector<8x32xf32>
    %cst_27 = arith.constant 1.000000e+00 : f32
    %93 = vector.broadcast %cst_27 : f32 to vector<8x32xf32>
    %94 = arith.addf %93, %92 : vector<8x32xf32>
    %95 = arith.divf %93, %94 : vector<8x32xf32>
    %96 = arith.mulf %87, %66 : vector<8x32xf32>
    %97 = arith.mulf %81, %89 : vector<8x32xf32>
    %98 = arith.addf %96, %97 : vector<8x32xf32>
    %99 = math.tanh %98 : vector<8x32xf32>
    %100 = arith.mulf %95, %99 : vector<8x32xf32>
    %c3_i32 = arith.constant 3 : i32
    %101 = arith.index_cast %c3_i32 : i32 to index
    %c0_28 = arith.constant 0 : index
    %c0_29 = arith.constant 0 : index
    %102 = vector.load %arg2[%101, %c0_28, %c0_29] : memref<4x8x128xbf16, #tpu.memory_space<vmem>>, vector<1x8x128xbf16>
    %103 = vector.shape_cast %102 : vector<1x8x128xbf16> to vector<8x128xbf16>
    %104 = arith.extf %103 : vector<8x128xbf16> to vector<8x128xf32>
    %c0_30 = arith.constant 0 : index
    %c0_31 = arith.constant 0 : index
    %105 = vector.load %arg3[%c0_30, %c0_31] : memref<32x128xf32, #tpu.memory_space<vmem>>, vector<32x128xf32>
    %cst_32 = arith.constant dense<0.000000e+00> : vector<8x128xf32>
    %106 = tpu.matmul %100, %105, %cst_32 {dimension_numbers = #tpu.dot_dimension_numbers<[1], [0], [0], [1], [0, 0, 1, 1], [], []>} : vector<8x32xf32>, vector<32x128xf32>, vector<8x128xf32> -> vector<8x128xf32>
    %107 = arith.addf %104, %106 : vector<8x128xf32>
    %108 = vector.extract_strided_slice %107 {offsets = [0, 0], sizes = [8, 32], strides = [1, 1]} : vector<8x128xf32> to vector<8x32xf32>
    %109 = arith.negf %108 : vector<8x32xf32>
    %110 = math.exp %109 : vector<8x32xf32>
    %cst_33 = arith.constant 1.000000e+00 : f32
    %111 = vector.broadcast %cst_33 : f32 to vector<8x32xf32>
    %112 = arith.addf %111, %110 : vector<8x32xf32>
    %113 = arith.divf %111, %112 : vector<8x32xf32>
    %114 = vector.extract_strided_slice %107 {offsets = [0, 32], sizes = [8, 32], strides = [1, 1]} : vector<8x128xf32> to vector<8x32xf32>
    %115 = arith.negf %114 : vector<8x32xf32>
    %116 = math.exp %115 : vector<8x32xf32>
    %cst_34 = arith.constant 1.000000e+00 : f32
    %117 = vector.broadcast %cst_34 : f32 to vector<8x32xf32>
    %118 = arith.addf %117, %116 : vector<8x32xf32>
    %119 = arith.divf %117, %118 : vector<8x32xf32>
    %120 = vector.extract_strided_slice %107 {offsets = [0, 64], sizes = [8, 32], strides = [1, 1]} : vector<8x128xf32> to vector<8x32xf32>
    %121 = math.tanh %120 : vector<8x32xf32>
    %122 = vector.extract_strided_slice %107 {offsets = [0, 96], sizes = [8, 32], strides = [1, 1]} : vector<8x128xf32> to vector<8x32xf32>
    %123 = arith.negf %122 : vector<8x32xf32>
    %124 = math.exp %123 : vector<8x32xf32>
    %cst_35 = arith.constant 1.000000e+00 : f32
    %125 = vector.broadcast %cst_35 : f32 to vector<8x32xf32>
    %126 = arith.addf %125, %124 : vector<8x32xf32>
    %127 = arith.divf %125, %126 : vector<8x32xf32>
    %128 = arith.mulf %119, %98 : vector<8x32xf32>
    %129 = arith.mulf %113, %121 : vector<8x32xf32>
    %130 = arith.addf %128, %129 : vector<8x32xf32>
    %131 = math.tanh %130 : vector<8x32xf32>
    %132 = arith.mulf %127, %131 : vector<8x32xf32>
    %c4_i32 = arith.constant 4 : i32
    %c0_36 = arith.constant 0 : index
    %c0_37 = arith.constant 0 : index
    %133 = vector.load %arg7[%c0_36, %c0_37] : memref<8x32xf32, #tpu.memory_space<vmem>>, vector<8x32xf32>
    tpu.vector_store %arg7[%c0_36, %c0_37], %132 {strides = array<i32>} : memref<8x32xf32, #tpu.memory_space<vmem>>, vector<8x32xf32>,
    %c0_38 = arith.constant 0 : index
    %c0_39 = arith.constant 0 : index
    %134 = vector.load %arg8[%c0_38, %c0_39] : memref<8x32xf32, #tpu.memory_space<vmem>>, vector<8x32xf32>
    tpu.vector_store %arg8[%c0_38, %c0_39], %130 {strides = array<i32>} : memref<8x32xf32, #tpu.memory_space<vmem>>, vector<8x32xf32>,
    %c1_i32_40 = arith.constant 1 : i32
    %135 = arith.cmpi eq, %arg1, %c1_i32_40 : i32
    %136 = arith.extui %135 : i1 to i32
    %c0_i32_41 = arith.constant 0 : i32
    %137 = arith.cmpi ne, %136, %c0_i32_41 : i32
    scf.if %137 {
      %c0_42 = arith.constant 0 : index
      %c0_43 = arith.constant 0 : index
      %138 = vector.load %arg4[%c0_42, %c0_43] : memref<32x128xf32, #tpu.memory_space<vmem>>, vector<32x128xf32>
      %cst_44 = arith.constant dense<0.000000e+00> : vector<8x128xf32>
      %139 = tpu.matmul %132, %138, %cst_44 {dimension_numbers = #tpu.dot_dimension_numbers<[1], [0], [0], [1], [0, 0, 1, 1], [], []>} : vector<8x32xf32>, vector<32x128xf32>, vector<8x128xf32> -> vector<8x128xf32>
      %c0_45 = arith.constant 0 : index
      %c0_46 = arith.constant 0 : index
      %140 = vector.load %arg5[%c0_45, %c0_46] : memref<1x128xf32, #tpu.memory_space<vmem>>, vector<1x128xf32>
      %141 = vector.broadcast %140 : vector<1x128xf32> to vector<8x128xf32>
      %142 = arith.addf %139, %141 : vector<8x128xf32>
      %c0_47 = arith.constant 0 : index
      %c0_48 = arith.constant 0 : index
      %143 = vector.load %arg6[%c0_47, %c0_48] : memref<8x128xf32, #tpu.memory_space<vmem>>, vector<8x128xf32>
      tpu.vector_store %arg6[%c0_47, %c0_48], %142 {strides = array<i32>} : memref<8x128xf32, #tpu.memory_space<vmem>>, vector<8x128xf32>,
    } else {
    }
    return
  }
  func.func @transform_0(%arg0: i32, %arg1: i32) -> (i32, i32, i32) {
    %c0_i32 = arith.constant 0 : i32
    %c0_i32_0 = arith.constant 0 : i32
    return %arg1, %arg0, %c0_i32 : i32, i32, i32
  }
  func.func @transform_1(%arg0: i32, %arg1: i32) -> (i32, i32) {
    %c0_i32 = arith.constant 0 : i32
    %c0_i32_0 = arith.constant 0 : i32
    %c0_i32_1 = arith.constant 0 : i32
    return %c0_i32, %c0_i32_0 : i32, i32
  }
  func.func @transform_2(%arg0: i32, %arg1: i32) -> (i32, i32) {
    %c0_i32 = arith.constant 0 : i32
    %c0_i32_0 = arith.constant 0 : i32
    %c0_i32_1 = arith.constant 0 : i32
    return %c0_i32, %c0_i32_0 : i32, i32
  }
  func.func @transform_3(%arg0: i32, %arg1: i32) -> (i32, i32) {
    %c0_i32 = arith.constant 0 : i32
    %c0_i32_0 = arith.constant 0 : i32
    %c0_i32_1 = arith.constant 0 : i32
    return %c0_i32, %c0_i32_0 : i32, i32
  }
  func.func @transform_4(%arg0: i32, %arg1: i32) -> (i32, i32) {
    %c0_i32 = arith.constant 0 : i32
    %c0_i32_0 = arith.constant 0 : i32
    return %arg0, %c0_i32 : i32, i32
  }
}

</mosaic_0001>

<llo_original>
// kernel: tpu_custom_call.1
$region0: #{tpu_custom_call.1}
  #allocation0 [shape = 'u32[]', space=smem, size = 0x4, offset = 0x4, fixed_abs, tag = 'smem constant byte address 0x4 - core index']
  #allocation1 [shape = 'u32[144,128]{1,0:T(1,128)}', space=vmem, size = 0x12000, scoped, tag = 'internal scratch']
  #allocation2 [shape = 'f32[8,32]{1,0:T(8,128)}', space=vmem, size = 0x1000, scoped, tag = 'scratch operand']
  #allocation3 [shape = 'f32[8,32]{1,0:T(8,128)}', space=vmem, size = 0x1000, scoped, tag = 'scratch operand']
  %s0 = inlined_call_operand.hbm [shape: bf16[8,8,128], index: 0, kind: input, shape index: {}]
  %s1 = inlined_call_operand.hbm [shape: f32[32,128], index: 1, kind: input, shape index: {}]
  %s2 = inlined_call_operand.hbm [shape: f32[32,128], index: 2, kind: input, shape index: {}]
  %s3 = inlined_call_operand.vmem [shape: f32[1,128], index: 3, kind: input, shape index: {}]
  %s4 = inlined_call_operand.hbm [shape: f32[8,128], index: 4, kind: output, shape index: {}]
  %s5 = sld [smem:[#allocation0]]
  $region69: #{tpu_custom_call.1} parent=0
    _
  %s7 = ssub.s32 1, %s5
  %s8 = scalar_select 0, %s7, %s5
  $region1: #{tpu_custom_call.1} parent=0
    #allocation4 [shape = 'u8[16384]{0}', space=vmem, size = 0x4000, scoped, tag = 'input window, operand 0']
    #allocation5 [shape = 's32[2]{0}', space=sflag, size = 0x8, scoped, tag = 'scoped memory for tpu_custom_call.1']
    #allocation6 [shape = 's32[2]{0}', space=sflag, size = 0x8, scoped, tag = 'scoped memory for tpu_custom_call.1']
    #allocation7 [shape = 'u8[16384]{0}', space=vmem, size = 0x4000, scoped, tag = 'input window, operand 1, single buffered']
    #allocation8 [shape = 's32[1]{0}', space=sflag, size = 0x4, scoped, tag = 'scoped memory for tpu_custom_call.1']
    #allocation9 [shape = 'u8[16384]{0}', space=vmem, size = 0x4000, scoped, tag = 'input window, operand 2, single buffered']
    #allocation10 [shape = 'u8[4096]{0}', space=vmem, size = 0x1000, scoped, tag = 'output window, operand 0, single buffered']
    %9 = vsyncpa [#allocation5], 0
    %s10 = scalar_lea.sflag [#allocation5], 1
    %11 = vsyncpa %s10, 0
    %12 = vsyncpa [#allocation8], 0
    %13 = vsyncpa [#allocation6], 0
    loop: start=0, step=1, limit=4
    $region2: #{tpu_custom_call.1} parent=1 // loop_pre_header
      _
    $region3: #{tpu_custom_call.1} parent=1 // loop_header
      %s15 = sphi 0, %s19
      %p16 = scmp.ge.s32.totalorder %s15, 4
      %s22 = sphi 0, %s34
      %s23 = sphi 0, %s30
      %s24 = sphi 0, %s22
      %s25 = sphi 0, %s23
      %s26 = sphi 0, %s24
      %s27 = sphi 0, %s25
      %s39 = sphi 0, %s41
      %s42 = sphi 0, %s39
      %s43 = sphi 0, %s42
      %s59 = sphi 0, %s43
      %s63 = sphi 0, %s63
      %s65 = sphi 0, %s63
      %s66 = sphi 0, %s65
      %s80 = sphi 0, %s66
      %s84 = sphi 0, %s84
      %s86 = sphi 0, %s84
      %s87 = sphi 0, %s86
      %s101 = sphi 0, %s87
      %s105 = sphi 0, %s105
      %s107 = sphi 0, %s105
      %s108 = sphi 0, %s107
      %s122 = sphi 0, %s108
      %s128 = sphi 0, %s130
      %s131 = sphi 0, %s128
      %s132 = sphi 0, %s131
      %s148 = sphi 0, %s132
    $region4: #{tpu_custom_call.1} parent=1 // loop_header_branch
      %18 = sbr.rel (%p16) target = $region8
    $region5: #{tpu_custom_call.1} parent=1 // loop_body
      %s20 = ssub.s32 %s15, 1
      %s21 = ssub.s32 %s15, 2
      %s28 = sadd.s32 1, %s23
      %p29 = scmp.ge.s32.totalorder %s28, 2
      %s30 = scalar_select %p29, 0, %s28
      %s31 = sadd.s32 1, %s22
      %s32 = scalar_select %p29, %s31, %s22
      %p33 = scmp.ge.s32.totalorder %s32, 1
      %s34 = scalar_select %p33, 0, %s32
      %s35 = ssub.s32 %s23, %s30
      %s36 = ssub.s32 %s22, %s34
      %s37 = sor.u32 %s35, %s36
      %p38 = scmp.eq.s32.totalorder %s37, 0
      %s40 = sadd.s32 %s39, 1
      %s41 = scalar_select %p38, %s39, %s40
      %p44 = pneg %p38
      %p45 = scmp.eq.s32.totalorder %s15, 1
      %p46 = por %p44, %p45
      %p47 = scmp.ne.s32.totalorder %s39, %s42
      %p48 = scmp.eq.s32.totalorder %s15, 0
      %p49 = por %p47, %p48
      %p50 = scmp.ne.s32.totalorder %s39, %s42
      %p51 = scmp.eq.s32.totalorder %s20, 1
      %p52 = por %p50, %p51
      %p53 = scmp.ne.s32.totalorder %s42, %s43
      %p54 = scmp.eq.s32.totalorder %s20, 0
      %p55 = por %p53, %p54
      %p56 = scmp.ne.s32.totalorder %s42, %s43
      %p57 = scmp.eq.s32.totalorder %s21, 1
      %p58 = por %p56, %p57
      %p60 = scmp.ne.s32.totalorder %s43, %s59
      %p61 = scmp.eq.s32.totalorder %s21, 0
      %p62 = por %p60, %p61
      %s64 = sadd.s32 %s63, 1
      %p67 = scmp.eq.s32.totalorder %s15, 1
      %p68 = scmp.ne.s32.totalorder %s63, %s65
      %p69 = scmp.eq.s32.totalorder %s15, 0
      %p70 = por %p68, %p69
      %p71 = scmp.ne.s32.totalorder %s63, %s65
      %p72 = scmp.eq.s32.totalorder %s20, 1
      %p73 = por %p71, %p72
      %p74 = scmp.ne.s32.totalorder %s65, %s66
      %p75 = scmp.eq.s32.totalorder %s20, 0
      %p76 = por %p74, %p75
      %p77 = scmp.ne.s32.totalorder %s65, %s66
      %p78 = scmp.eq.s32.totalorder %s21, 1
      %p79 = por %p77, %p78
      %p81 = scmp.ne.s32.totalorder %s66, %s80
      %p82 = scmp.eq.s32.totalorder %s21, 0
      %p83 = por %p81, %p82
      %s85 = sadd.s32 %s84, 1
      %p88 = scmp.eq.s32.totalorder %s15, 1
      %p89 = scmp.ne.s32.totalorder %s84, %s86
      %p90 = scmp.eq.s32.totalorder %s15, 0
      %p91 = por %p89, %p90
      %p92 = scmp.ne.s32.totalorder %s84, %s86
      %p93 = scmp.eq.s32.totalorder %s20, 1
      %p94 = por %p92, %p93
      %p95 = scmp.ne.s32.totalorder %s86, %s87
      %p96 = scmp.eq.s32.totalorder %s20, 0
      %p97 = por %p95, %p96
      %p98 = scmp.ne.s32.totalorder %s86, %s87
      %p99 = scmp.eq.s32.totalorder %s21, 1
      %p100 = por %p98, %p99
      %p102 = scmp.ne.s32.totalorder %s87, %s101
      %p103 = scmp.eq.s32.totalorder %s21, 0
      %p104 = por %p102, %p103
      %s106 = sadd.s32 %s105, 1
      %p109 = scmp.eq.s32.totalorder %s15, 1
      %p110 = scmp.ne.s32.totalorder %s105, %s107
      %p111 = scmp.eq.s32.totalorder %s15, 0
      %p112 = por %p110, %p111
      %p113 = scmp.ne.s32.totalorder %s105, %s107
      %p114 = scmp.eq.s32.totalorder %s20, 1
      %p115 = por %p113, %p114
      %p116 = scmp.ne.s32.totalorder %s107, %s108
      %p117 = scmp.eq.s32.totalorder %s20, 0
      %p118 = por %p116, %p117
      %p119 = scmp.ne.s32.totalorder %s107, %s108
      %p120 = scmp.eq.s32.totalorder %s21, 1
      %p121 = por %p119, %p120
      %p123 = scmp.ne.s32.totalorder %s108, %s122
      %p124 = scmp.eq.s32.totalorder %s21, 0
      %p125 = por %p123, %p124
      %s126 = ssub.s32 %s22, %s34
      %p127 = scmp.eq.s32.totalorder %s126, 0
      %s129 = sadd.s32 %s128, 1
      %s130 = scalar_select %p127, %s128, %s129
      %p133 = pneg %p127
      %p134 = scmp.eq.s32.totalorder %s15, 1
      %p135 = por %p133, %p134
      %p136 = scmp.ne.s32.totalorder %s128, %s131
      %p137 = scmp.eq.s32.totalorder %s15, 0
      %p138 = por %p136, %p137
      %p139 = scmp.ne.s32.totalorder %s128, %s131
      %p140 = scmp.eq.s32.totalorder %s20, 1
      %p141 = por %p139, %p140
      %p142 = scmp.ne.s32.totalorder %s131, %s132
      %p143 = scmp.eq.s32.totalorder %s20, 0
      %p144 = por %p142, %p143
      %p145 = scmp.ne.s32.totalorder %s131, %s132
      %p146 = scmp.eq.s32.totalorder %s21, 1
      %p147 = por %p145, %p146
      %p149 = scmp.ne.s32.totalorder %s132, %s148
      %p150 = scmp.eq.s32.totalorder %s21, 0
      %p151 = por %p149, %p150
      %p152 = scmp.le.s32.totalorder 1, %s15
      %p153 = scmp.lt.s32.totalorder %s15, 3
      %p154 = pnand %p152, %p153
      %p155 = pneg %p154
      // Predicated region
      $region9: #{tpu_custom_call.1} parent=5 // pred_check
        _
      $region10: #{tpu_custom_call.1} parent=5 // pred_check_branch
        %157 = sbr.rel (%p154) target = $region12
      $region11: #{tpu_custom_call.1} parent=5 // pred_region
        %s158 = ssub.s32 %s15, 1
        // Predicated region
        $region13: #{tpu_custom_call.1} parent=11 // pred_check
          %p159 = pneg %p76
        $region14: #{tpu_custom_call.1} parent=11 // pred_check_branch
          %161 = sbr.rel (%p159) target = $region16
        $region15: #{tpu_custom_call.1} parent=11 // pred_region
          %s163 = ssub.s32 512, 512
          %164 = vsyncadd [#allocation8], %s163
          %s165 = sshll.u32 [#allocation7], 4
          %s166 = int_to_ptr.vmem [resolvable:$true] %s165
          %171 = dma.hbm_to_vmem [thread:$0]  %s1, 512, %s166, [#allocation8], 128, 128, 8
        $region16: #{tpu_custom_call.1} parent=11 // pred_fallthru
          _
        // Predicated region
        $region17: #{tpu_custom_call.1} parent=11 // pred_check
          %p172 = pneg %p97
        $region18: #{tpu_custom_call.1} parent=11 // pred_check_branch
          %174 = sbr.rel (%p172) target = $region20
        $region19: #{tpu_custom_call.1} parent=11 // pred_region
          %s176 = ssub.s32 512, 512
          %177 = vsyncadd [#allocation8], %s176
          %s178 = sshll.u32 [#allocation9], 4
          %s179 = int_to_ptr.vmem [resolvable:$true] %s178
          %184 = dma.hbm_to_vmem [thread:$0]  %s2, 512, %s179, [#allocation8], 128, 128, 8
        $region20: #{tpu_custom_call.1} parent=11 // pred_fallthru
          _
        // Predicated region
        $region21: #{tpu_custom_call.1} parent=11 // pred_check
          %p185 = pneg %p118
        $region22: #{tpu_custom_call.1} parent=11 // pred_check_branch
          %187 = sbr.rel (%p185) target = $region24
        $region23: #{tpu_custom_call.1} parent=11 // pred_region
          _
        $region24: #{tpu_custom_call.1} parent=11 // pred_fallthru
          _
      $region12: #{tpu_custom_call.1} parent=5 // pred_fallthru
        _
      %p188 = scmp.lt.s32.totalorder %s15, 2
      // Predicated region
      $region25: #{tpu_custom_call.1} parent=5 // pred_check
        %p189 = pneg %p188
      $region26: #{tpu_custom_call.1} parent=5 // pred_check_branch
        %191 = sbr.rel (%p189) target = $region28
      $region27: #{tpu_custom_call.1} parent=5 // pred_region
        // Predicated region
        $region29: #{tpu_custom_call.1} parent=27 // pred_check
          %p192 = pneg %p49
        $region30: #{tpu_custom_call.1} parent=27 // pred_check_branch
          %194 = sbr.rel (%p192) target = $region32
        $region31: #{tpu_custom_call.1} parent=27 // pred_region
          %s195 = sand.u32 %s39, 1
          %s196 = scalar_lea.sflag [#allocation5], %s195
          %s197 = sand.u32 %s39, 1
          %s198 = smul.addr %s197, 16
          %s199 = scalar_lea.vmem [#allocation4], %s198
          %s200 = smul.u32 4, %s23
          %s202 = ssub.s32 256, 256
          %203 = vsyncadd %s196, %s202
          %s204 = sadd.s32 %s22, %s200
          %s205 = smul.addr %s204, 64
          %s206 = scalar_lea.hbm %s0, %s205
          %s207 = sshll.u32 %s199, 4
          %s208 = int_to_ptr.vmem [resolvable:$true] %s207
          %213 = dma.hbm_to_vmem [thread:$0]  %s206, 256, %s208, %s196, 64, 64, 4
        $region32: #{tpu_custom_call.1} parent=27 // pred_fallthru
          _
      $region28: #{tpu_custom_call.1} parent=5 // pred_fallthru
        _
      %p214 = scmp.le.s32.totalorder 1, %s15
      %p215 = scmp.lt.s32.totalorder %s15, 3
      %p216 = pnand %p214, %p215
      %p217 = pneg %p216
      // Predicated region
      $region33: #{tpu_custom_call.1} parent=5 // pred_check
        _
      $region34: #{tpu_custom_call.1} parent=5 // pred_check_branch
        %219 = sbr.rel (%p216) target = $region36
      $region35: #{tpu_custom_call.1} parent=5 // pred_region
        %s220 = ssub.s32 %s15, 1
        %s221 = sand.u32 %s42, 1
        %s222 = scalar_lea.sflag [#allocation5], %s221
        %s223 = sand.u32 %s42, 1
        %s224 = smul.addr %s223, 16
        %s225 = scalar_lea.vmem [#allocation4], %s224
        // Predicated region
        $region37: #{tpu_custom_call.1} parent=35 // pred_check
          %p226 = pneg %p55
        $region38: #{tpu_custom_call.1} parent=35 // pred_check_branch
          %228 = sbr.rel (%p226) target = $region40
        $region39: #{tpu_custom_call.1} parent=35 // pred_region
          %229 = dma.done %s222, 256
        $region40: #{tpu_custom_call.1} parent=35 // pred_fallthru
          _
        // Predicated region
        $region41: #{tpu_custom_call.1} parent=35 // pred_check
          %p230 = pneg %p76
        $region42: #{tpu_custom_call.1} parent=35 // pred_check_branch
          %232 = sbr.rel (%p230) target = $region44
        $region43: #{tpu_custom_call.1} parent=35 // pred_region
          %233 = dma.done [#allocation8], 512
        $region44: #{tpu_custom_call.1} parent=35 // pred_fallthru
          _
        // Predicated region
        $region45: #{tpu_custom_call.1} parent=35 // pred_check
          %p234 = pneg %p97
        $region46: #{tpu_custom_call.1} parent=35 // pred_check_branch
          %236 = sbr.rel (%p234) target = $region48
        $region47: #{tpu_custom_call.1} parent=35 // pred_region
          %237 = dma.done [#allocation8], 512
        $region48: #{tpu_custom_call.1} parent=35 // pred_fallthru
          _
        %s238 = sand.u32 %s42, 1
        %s239 = scalar_lea.sflag [#allocation5], %s238
        %s240 = sand.u32 %s42, 1
        %s241 = smul.addr %s240, 16
        %s242 = scalar_lea.vmem [#allocation4], %s241
        %p243 = pneg %p55
        %p244 = pneg %p52
        %p245 = pneg %p76
        %p246 = pneg %p73
        %p247 = pneg %p97
        %p248 = pneg %p94
        %p249 = pneg %p118
        %p250 = pneg %p115
        %p251 = pneg %p144
        %p252 = pneg %p141
        %s253 = smul.u32 4, %s25
        %p254 = scmp.eq.s32.totalorder %s25, 0
        // Predicated region
        $region49: #{tpu_custom_call.1} parent=35 // pred_check
          %p255 = pneg %p254
        $region50: #{tpu_custom_call.1} parent=35 // pred_check_branch
          %257 = sbr.rel (%p255) target = $region52
        $region51: #{tpu_custom_call.1} parent=35 // pred_region
          %vm258 = vcmask 261120
          %259 = vst.msk [vmem:[#allocation2] sm:$0xff] %vm258, 0.0
          %260 = vst.msk [vmem:[#allocation3] sm:$0xff] %vm258, 0.0
        $region52: #{tpu_custom_call.1} parent=35 // pred_fallthru
          _
        %v261 = vld [vmem:[#allocation2] sm:$0xff]
        %v262 = vld [vmem:[#allocation3] sm:$0xff]
        %v263 = vld [vmem:[%s225] sm:$0xf]
        %v264 = vunpack.c.l.bf16 %v263
        %v265 = vld [vmem:[#allocation7] sm:$0xff]
        %v266 = vld [vmem:[#allocation7 + $0x8] sm:$0xff]
        %v267 = vld [vmem:[#allocation7 + $0x10] sm:$0xff]
        %v268 = vld [vmem:[#allocation7 + $0x18] sm:$0xff]
        %vm269 = vcmask 261120
        %v271 = vsel %vm269, %v261, 0
        %273 = vmatprep.subr.mxu0 0.0
        %274 = vmatpush1.msra.mxu0 %v265
        %275 = vmatprep.subr.mxu0 0.0
        %276 = vmatpush1.msra.mxu0 %v266
        %277 = vmatprep.subr.mxu0 0.0
        %278 = vmatpush1.msra.mxu0 %v267
        %279 = vmatprep.subr.mxu0 0.0
        %280 = vmatpush1.msra.mxu0 %v268
        %281 = vmatprep.subr.mxu0 0.0
        %282 = vmatpush1.msra.mxu0 0.0
        %283 = vmatprep.subr.mxu0 0.0
        %284 = vmatpush1.msra.mxu0 0.0
        %285 = vmatprep.subr.mxu0 0.0
        %286 = vmatpush1.msra.mxu0 0.0
        %287 = vmatprep.subr.mxu0 0.0
        %288 = vmatpush1.msra.mxu0 0.0
        %289 = vmatprep.subr.mxu0 0.0
        %290 = vmatpush1.msra.mxu0 0.0
        %291 = vmatprep.subr.mxu0 0.0
        %292 = vmatpush1.msra.mxu0 0.0
        %293 = vmatprep.subr.mxu0 0.0
        %294 = vmatpush1.msra.mxu0 0.0
        %295 = vmatprep.subr.mxu0 0.0
        %296 = vmatpush1.msra.mxu0 0.0
        %297 = vmatprep.subr.mxu0 0.0
        %298 = vmatpush1.msra.mxu0 0.0
        %299 = vmatprep.subr.mxu0 0.0
        %300 = vmatpush1.msra.mxu0 0.0
        %301 = vmatprep.subr.mxu0 0.0
        %302 = vmatpush1.msra.mxu0 0.0
        %303 = vmatprep.subr.mxu0 0.0
        %304 = vmatpush1.msra.mxu0 0.0
        %305 = vmatprep.subr.mxu0 0.0
        %306 = vmatpush1.msra.mxu0 0.0
        %307 = vmatprep.subr.mxu0 0.0
        %308 = vmatpush1.msra.mxu0 0.0
        %309 = vmatprep.subr.mxu0 0.0
        %310 = vmatpush1.msra.mxu0 0.0
        %311 = vmatprep.subr.mxu0 0.0
        %312 = vmatpush1.msra.mxu0 0.0
        %313 = vmatprep.subr.mxu0 0.0
        %314 = vmatpush1.msra.mxu0 0.0
        %315 = vmatprep.subr.mxu0 0.0
        %316 = vmatpush1.msra.mxu0 0.0
        %317 = vmatprep.subr.mxu0 0.0
        %318 = vmatpush1.msra.mxu0 0.0
        %319 = vmatprep.subr.mxu0 0.0
        %320 = vmatpush1.msra.mxu0 0.0
        %321 = vmatprep.subr.mxu0 0.0
        %322 = vmatpush1.msra.mxu0 0.0
        %323 = vmatprep.subr.mxu0 0.0
        %324 = vmatpush1.msra.mxu0 0.0
        %325 = vmatprep.subr.mxu0 0.0
        %326 = vmatpush1.msra.mxu0 0.0
        %327 = vmatprep.subr.mxu0 0.0
        %328 = vmatpush1.msra.mxu0 0.0
        %329 = vmatprep.subr.mxu0 0.0
        %330 = vmatpush1.msra.mxu0 0.0
        %331 = vmatprep.subr.mxu0 0.0
        %332 = vmatpush1.msra.mxu0 0.0
        %333 = vmatprep.subr.mxu0 0.0
        %334 = vmatpush1.msra.mxu0 0.0
        %335 = vmatprep.subr.mxu0 0.0
        %336 = vmatpush1.msra.mxu0 0.0
        %337 = vmatprep.mubr.f32.mxu0 0.0
        %338 = vmatmul.mubr.f32.gmra.mrb[0].mxu0 %v271
        %v339 = vpop.f32.mrb[0].mxu0
        %v340 = vadd.f32 0.0, %v339
        %v341 = vpop.f32.mrb[0].mxu0
        %342 = vdwg.mxu0
        %v343 = vadd.f32 %v264, %v340
        %v344 = vxor.u32 %v343, 2147483648
        %v345 = vmul.f32 %v344, 1.442695
        %v346 = vpow.pop %v345
        %v347 = vadd.f32 %v346, 1.0
        %v348 = vrcp.pop %v347
        %v349 = vmul.f32 1.0, %v348
        %v350 = vtanh.pop %v343
        %352 = vrot.lane.b32.xlu0 %v262, 32
        %v353 = vpop.permute.xlu0 %352
        %v355 = vmul.f32 %v349, %v353
        %357 = vrot.lane.b32.xlu0 %v350, 64
        %v358 = vpop.permute.xlu0 %357
        %v360 = vmul.f32 %v349, %v358
        %362 = vrot.lane.b32.xlu0 %v360, 32
        %v363 = vpop.permute.xlu0 %362
        %v365 = vadd.f32 %v355, %v363
        %v366 = vtanh.pop %v365
        %368 = vrot.lane.b32.xlu0 %v366, 64
        %v369 = vpop.permute.xlu0 %368
        %v371 = vmul.f32 %v349, %v369
        %s372 = scalar_lea.vmem %s225, 4 [#allocation4]
        %v373 = vld [vmem:[%s372] sm:$0xf]
        %v374 = vunpack.c.l.bf16 %v373
        %376 = vrot.lane.b32.xlu0 %v371, 32
        %v377 = vpop.permute.xlu0 %376
        %v378 = vsel %vm269, %v377, 0
        %380 = vmatprep.subr.mxu0 0.0
        %381 = vmatpush1.msra.mxu0 %v265
        %382 = vmatprep.subr.mxu0 0.0
        %383 = vmatpush1.msra.mxu0 %v266
        %384 = vmatprep.subr.mxu0 0.0
        %385 = vmatpush1.msra.mxu0 %v267
        %386 = vmatprep.subr.mxu0 0.0
        %387 = vmatpush1.msra.mxu0 %v268
        %388 = vmatprep.subr.mxu0 0.0
        %389 = vmatpush1.msra.mxu0 0.0
        %390 = vmatprep.subr.mxu0 0.0
        %391 = vmatpush1.msra.mxu0 0.0
        %392 = vmatprep.subr.mxu0 0.0
        %393 = vmatpush1.msra.mxu0 0.0
        %394 = vmatprep.subr.mxu0 0.0
        %395 = vmatpush1.msra.mxu0 0.0
        %396 = vmatprep.subr.mxu0 0.0
        %397 = vmatpush1.msra.mxu0 0.0
        %398 = vmatprep.subr.mxu0 0.0
        %399 = vmatpush1.msra.mxu0 0.0
        %400 = vmatprep.subr.mxu0 0.0
        %401 = vmatpush1.msra.mxu0 0.0
        %402 = vmatprep.subr.mxu0 0.0
        %403 = vmatpush1.msra.mxu0 0.0
        %404 = vmatprep.subr.mxu0 0.0
        %405 = vmatpush1.msra.mxu0 0.0
        %406 = vmatprep.subr.mxu0 0.0
        %407 = vmatpush1.msra.mxu0 0.0
        %408 = vmatprep.subr.mxu0 0.0
        %409 = vmatpush1.msra.mxu0 0.0
        %410 = vmatprep.subr.mxu0 0.0
        %411 = vmatpush1.msra.mxu0 0.0
        %412 = vmatprep.subr.mxu0 0.0
        %413 = vmatpush1.msra.mxu0 0.0
        %414 = vmatprep.subr.mxu0 0.0
        %415 = vmatpush1.msra.mxu0 0.0
        %416 = vmatprep.subr.mxu0 0.0
        %417 = vmatpush1.msra.mxu0 0.0
        %418 = vmatprep.subr.mxu0 0.0
        %419 = vmatpush1.msra.mxu0 0.0
        %420 = vmatprep.subr.mxu0 0.0
        %421 = vmatpush1.msra.mxu0 0.0
        %422 = vmatprep.subr.mxu0 0.0
        %423 = vmatpush1.msra.mxu0 0.0
        %424 = vmatprep.subr.mxu0 0.0
        %425 = vmatpush1.msra.mxu0 0.0
        %426 = vmatprep.subr.mxu0 0.0
        %427 = vmatpush1.msra.mxu0 0.0
        %428 = vmatprep.subr.mxu0 0.0
        %429 = vmatpush1.msra.mxu0 0.0
        %430 = vmatprep.subr.mxu0 0.0
        %431 = vmatpush1.msra.mxu0 0.0
        %432 = vmatprep.subr.mxu0 0.0
        %433 = vmatpush1.msra.mxu0 0.0
        %434 = vmatprep.subr.mxu0 0.0
        %435 = vmatpush1.msra.mxu0 0.0
        %436 = vmatprep.subr.mxu0 0.0
        %437 = vmatpush1.msra.mxu0 0.0
        %438 = vmatprep.subr.mxu0 0.0
        %439 = vmatpush1.msra.mxu0 0.0
        %440 = vmatprep.subr.mxu0 0.0
        %441 = vmatpush1.msra.mxu0 0.0
        %442 = vmatprep.subr.mxu0 0.0
        %443 = vmatpush1.msra.mxu0 0.0
        %444 = vmatprep.mubr.f32.mxu0 0.0
        %445 = vmatmul.mubr.f32.gmra.mrb[0].mxu0 %v378
        %v446 = vpop.f32.mrb[0].mxu0
        %v447 = vadd.f32 0.0, %v446
        %v448 = vpop.f32.mrb[0].mxu0
        %449 = vdwg.mxu0
        %v450 = vadd.f32 %v374, %v447
        %v451 = vxor.u32 %v450, 2147483648
        %v452 = vmul.f32 %v451, 1.442695
        %v453 = vpow.pop %v452
        %v454 = vadd.f32 %v453, 1.0
        %v455 = vrcp.pop %v454
        %v456 = vmul.f32 1.0, %v455
        %v457 = vtanh.pop %v450
        %v458 = vmul.f32 %v456, %v365
        %460 = vrot.lane.b32.xlu0 %v457, 64
        %v461 = vpop.permute.xlu0 %460
        %v463 = vmul.f32 %v456, %v461
        %465 = vrot.lane.b32.xlu0 %v463, 32
        %v466 = vpop.permute.xlu0 %465
        %v468 = vadd.f32 %v458, %v466
        %v469 = vtanh.pop %v468
        %471 = vrot.lane.b32.xlu0 %v469, 64
        %v472 = vpop.permute.xlu0 %471
        %v474 = vmul.f32 %v456, %v472
        %s475 = scalar_lea.vmem %s225, 8 [#allocation4]
        %v476 = vld [vmem:[%s475] sm:$0xf]
        %v477 = vunpack.c.l.bf16 %v476
        %479 = vrot.lane.b32.xlu0 %v474, 32
        %v480 = vpop.permute.xlu0 %479
        %v481 = vsel %vm269, %v480, 0
        %483 = vmatprep.subr.mxu0 0.0
        %484 = vmatpush1.msra.mxu0 %v265
        %485 = vmatprep.subr.mxu0 0.0
        %486 = vmatpush1.msra.mxu0 %v266
        %487 = vmatprep.subr.mxu0 0.0
        %488 = vmatpush1.msra.mxu0 %v267
        %489 = vmatprep.subr.mxu0 0.0
        %490 = vmatpush1.msra.mxu0 %v268
        %491 = vmatprep.subr.mxu0 0.0
        %492 = vmatpush1.msra.mxu0 0.0
        %493 = vmatprep.subr.mxu0 0.0
        %494 = vmatpush1.msra.mxu0 0.0
        %495 = vmatprep.subr.mxu0 0.0
        %496 = vmatpush1.msra.mxu0 0.0
        %497 = vmatprep.subr.mxu0 0.0
        %498 = vmatpush1.msra.mxu0 0.0
        %499 = vmatprep.subr.mxu0 0.0
        %500 = vmatpush1.msra.mxu0 0.0
        %501 = vmatprep.subr.mxu0 0.0
        %502 = vmatpush1.msra.mxu0 0.0
        %503 = vmatprep.subr.mxu0 0.0
        %504 = vmatpush1.msra.mxu0 0.0
        %505 = vmatprep.subr.mxu0 0.0
        %506 = vmatpush1.msra.mxu0 0.0
        %507 = vmatprep.subr.mxu0 0.0
        %508 = vmatpush1.msra.mxu0 0.0
        %509 = vmatprep.subr.mxu0 0.0
        %510 = vmatpush1.msra.mxu0 0.0
        %511 = vmatprep.subr.mxu0 0.0
        %512 = vmatpush1.msra.mxu0 0.0
        %513 = vmatprep.subr.mxu0 0.0
        %514 = vmatpush1.msra.mxu0 0.0
        %515 = vmatprep.subr.mxu0 0.0
        %516 = vmatpush1.msra.mxu0 0.0
        %517 = vmatprep.subr.mxu0 0.0
        %518 = vmatpush1.msra.mxu0 0.0
        %519 = vmatprep.subr.mxu0 0.0
        %520 = vmatpush1.msra.mxu0 0.0
        %521 = vmatprep.subr.mxu0 0.0
        %522 = vmatpush1.msra.mxu0 0.0
        %523 = vmatprep.subr.mxu0 0.0
        %524 = vmatpush1.msra.mxu0 0.0
        %525 = vmatprep.subr.mxu0 0.0
        %526 = vmatpush1.msra.mxu0 0.0
        %527 = vmatprep.subr.mxu0 0.0
        %528 = vmatpush1.msra.mxu0 0.0
        %529 = vmatprep.subr.mxu0 0.0
        %530 = vmatpush1.msra.mxu0 0.0
        %531 = vmatprep.subr.mxu0 0.0
        %532 = vmatpush1.msra.mxu0 0.0
        %533 = vmatprep.subr.mxu0 0.0
        %534 = vmatpush1.msra.mxu0 0.0
        %535 = vmatprep.subr.mxu0 0.0
        %536 = vmatpush1.msra.mxu0 0.0
        %537 = vmatprep.subr.mxu0 0.0
        %538 = vmatpush1.msra.mxu0 0.0
        %539 = vmatprep.subr.mxu0 0.0
        %540 = vmatpush1.msra.mxu0 0.0
        %541 = vmatprep.subr.mxu0 0.0
        %542 = vmatpush1.msra.mxu0 0.0
        %543 = vmatprep.subr.mxu0 0.0
        %544 = vmatpush1.msra.mxu0 0.0
        %545 = vmatprep.subr.mxu0 0.0
        %546 = vmatpush1.msra.mxu0 0.0
        %547 = vmatprep.mubr.f32.mxu0 0.0
        %548 = vmatmul.mubr.f32.gmra.mrb[0].mxu0 %v481
        %v549 = vpop.f32.mrb[0].mxu0
        %v550 = vadd.f32 0.0, %v549
        %v551 = vpop.f32.mrb[0].mxu0
        %552 = vdwg.mxu0
        %v553 = vadd.f32 %v477, %v550
        %v554 = vxor.u32 %v553, 2147483648
        %v555 = vmul.f32 %v554, 1.442695
        %v556 = vpow.pop %v555
        %v557 = vadd.f32 %v556, 1.0
        %v558 = vrcp.pop %v557
        %v559 = vmul.f32 1.0, %v558
        %v560 = vtanh.pop %v553
        %v561 = vmul.f32 %v559, %v468
        %563 = vrot.lane.b32.xlu0 %v560, 64
        %v564 = vpop.permute.xlu0 %563
        %v566 = vmul.f32 %v559, %v564
        %568 = vrot.lane.b32.xlu0 %v566, 32
        %v569 = vpop.permute.xlu0 %568
        %v571 = vadd.f32 %v561, %v569
        %v572 = vtanh.pop %v571
        %574 = vrot.lane.b32.xlu0 %v572, 64
        %v575 = vpop.permute.xlu0 %574
        %v577 = vmul.f32 %v559, %v575
        %s578 = scalar_lea.vmem %s225, 12 [#allocation4]
        %v579 = vld [vmem:[%s578] sm:$0xf]
        %v580 = vunpack.c.l.bf16 %v579
        %582 = vrot.lane.b32.xlu0 %v577, 32
        %v583 = vpop.permute.xlu0 %582
        %v584 = vsel %vm269, %v583, 0
        %586 = vmatprep.subr.mxu0 0.0
        %587 = vmatpush1.msra.mxu0 %v265
        %588 = vmatprep.subr.mxu0 0.0
        %589 = vmatpush1.msra.mxu0 %v266
        %590 = vmatprep.subr.mxu0 0.0
        %591 = vmatpush1.msra.mxu0 %v267
        %592 = vmatprep.subr.mxu0 0.0
        %593 = vmatpush1.msra.mxu0 %v268
        %594 = vmatprep.subr.mxu0 0.0
        %595 = vmatpush1.msra.mxu0 0.0
        %596 = vmatprep.subr.mxu0 0.0
        %597 = vmatpush1.msra.mxu0 0.0
        %598 = vmatprep.subr.mxu0 0.0
        %599 = vmatpush1.msra.mxu0 0.0
        %600 = vmatprep.subr.mxu0 0.0
        %601 = vmatpush1.msra.mxu0 0.0
        %602 = vmatprep.subr.mxu0 0.0
        %603 = vmatpush1.msra.mxu0 0.0
        %604 = vmatprep.subr.mxu0 0.0
        %605 = vmatpush1.msra.mxu0 0.0
        %606 = vmatprep.subr.mxu0 0.0
        %607 = vmatpush1.msra.mxu0 0.0
        %608 = vmatprep.subr.mxu0 0.0
        %609 = vmatpush1.msra.mxu0 0.0
        %610 = vmatprep.subr.mxu0 0.0
        %611 = vmatpush1.msra.mxu0 0.0
        %612 = vmatprep.subr.mxu0 0.0
        %613 = vmatpush1.msra.mxu0 0.0
        %614 = vmatprep.subr.mxu0 0.0
        %615 = vmatpush1.msra.mxu0 0.0
        %616 = vmatprep.subr.mxu0 0.0
        %617 = vmatpush1.msra.mxu0 0.0
        %618 = vmatprep.subr.mxu0 0.0
        %619 = vmatpush1.msra.mxu0 0.0
        %620 = vmatprep.subr.mxu0 0.0
        %621 = vmatpush1.msra.mxu0 0.0
        %622 = vmatprep.subr.mxu0 0.0
        %623 = vmatpush1.msra.mxu0 0.0
        %624 = vmatprep.subr.mxu0 0.0
        %625 = vmatpush1.msra.mxu0 0.0
        %626 = vmatprep.subr.mxu0 0.0
        %627 = vmatpush1.msra.mxu0 0.0
        %628 = vmatprep.subr.mxu0 0.0
        %629 = vmatpush1.msra.mxu0 0.0
        %630 = vmatprep.subr.mxu0 0.0
        %631 = vmatpush1.msra.mxu0 0.0
        %632 = vmatprep.subr.mxu0 0.0
        %633 = vmatpush1.msra.mxu0 0.0
        %634 = vmatprep.subr.mxu0 0.0
        %635 = vmatpush1.msra.mxu0 0.0
        %636 = vmatprep.subr.mxu0 0.0
        %637 = vmatpush1.msra.mxu0 0.0
        %638 = vmatprep.subr.mxu0 0.0
        %639 = vmatpush1.msra.mxu0 0.0
        %640 = vmatprep.subr.mxu0 0.0
        %641 = vmatpush1.msra.mxu0 0.0
        %642 = vmatprep.subr.mxu0 0.0
        %643 = vmatpush1.msra.mxu0 0.0
        %644 = vmatprep.subr.mxu0 0.0
        %645 = vmatpush1.msra.mxu0 0.0
        %646 = vmatprep.subr.mxu0 0.0
        %647 = vmatpush1.msra.mxu0 0.0
        %648 = vmatprep.subr.mxu0 0.0
        %649 = vmatpush1.msra.mxu0 0.0
        %650 = vmatprep.mubr.f32.mxu0 0.0
        %651 = vmatmul.mubr.f32.gmra.mrb[0].mxu0 %v584
        %v652 = vpop.f32.mrb[0].mxu0
        %v653 = vadd.f32 0.0, %v652
        %v654 = vpop.f32.mrb[0].mxu0
        %655 = vdwg.mxu0
        %v656 = vadd.f32 %v580, %v653
        %v657 = vxor.u32 %v656, 2147483648
        %v658 = vmul.f32 %v657, 1.442695
        %v659 = vpow.pop %v658
        %v660 = vadd.f32 %v659, 1.0
        %v661 = vrcp.pop %v660
        %v662 = vmul.f32 1.0, %v661
        %v663 = vtanh.pop %v656
        %v664 = vmul.f32 %v662, %v571
        %666 = vrot.lane.b32.xlu0 %v663, 64
        %v667 = vpop.permute.xlu0 %666
        %v669 = vmul.f32 %v662, %v667
        %671 = vrot.lane.b32.xlu0 %v669, 32
        %v672 = vpop.permute.xlu0 %671
        %v674 = vadd.f32 %v664, %v672
        %v675 = vtanh.pop %v674
        %677 = vrot.lane.b32.xlu0 %v675, 64
        %v678 = vpop.permute.xlu0 %677
        %v680 = vmul.f32 %v662, %v678
        %682 = vrot.lane.b32.xlu0 %v680, 32
        %v683 = vpop.permute.xlu0 %682
        %685 = vst.msk [vmem:[#allocation2] sm:$0xff] %vm269, %v683
        %687 = vrot.lane.b32.xlu0 %v674, 96
        %v688 = vpop.permute.xlu0 %687
        %690 = vst.msk [vmem:[#allocation3] sm:$0xff] %vm269, %v688
        %p691 = scmp.eq.s32.totalorder %s25, 1
        // Predicated region
        $region53: #{tpu_custom_call.1} parent=35 // pred_check
          %p692 = pneg %p691
        $region54: #{tpu_custom_call.1} parent=35 // pred_check_branch
          %694 = sbr.rel (%p692) target = $region56
        $region55: #{tpu_custom_call.1} parent=35 // pred_region
          %v695 = vld [vmem:[#allocation9] sm:$0xff]
          %v696 = vld [vmem:[#allocation9 + $0x8] sm:$0xff]
          %v697 = vld [vmem:[#allocation9 + $0x10] sm:$0xff]
          %v698 = vld [vmem:[#allocation9 + $0x18] sm:$0xff]
          %v699 = vld [vmem:[%s3] sm:$0x1]
          %v701 = vlaneseq
          %v702 = vshrl.u32 %v701, 7
          %v703 = vsub.s32 0, %v702
          %v704 = vrot.slane %v699, %v703
          %v706 = vsel %vm269, %v683, 0
          %708 = vmatprep.subr.mxu0 0.0
          %709 = vmatpush1.msra.mxu0 %v695
          %710 = vmatprep.subr.mxu0 0.0
          %711 = vmatpush1.msra.mxu0 %v696
          %712 = vmatprep.subr.mxu0 0.0
          %713 = vmatpush1.msra.mxu0 %v697
          %714 = vmatprep.subr.mxu0 0.0
          %715 = vmatpush1.msra.mxu0 %v698
          %716 = vmatprep.subr.mxu0 0.0
          %717 = vmatpush1.msra.mxu0 0.0
          %718 = vmatprep.subr.mxu0 0.0
          %719 = vmatpush1.msra.mxu0 0.0
          %720 = vmatprep.subr.mxu0 0.0
          %721 = vmatpush1.msra.mxu0 0.0
          %722 = vmatprep.subr.mxu0 0.0
          %723 = vmatpush1.msra.mxu0 0.0
          %724 = vmatprep.subr.mxu0 0.0
          %725 = vmatpush1.msra.mxu0 0.0
          %726 = vmatprep.subr.mxu0 0.0
          %727 = vmatpush1.msra.mxu0 0.0
          %728 = vmatprep.subr.mxu0 0.0
          %729 = vmatpush1.msra.mxu0 0.0
          %730 = vmatprep.subr.mxu0 0.0
          %731 = vmatpush1.msra.mxu0 0.0
          %732 = vmatprep.subr.mxu0 0.0
          %733 = vmatpush1.msra.mxu0 0.0
          %734 = vmatprep.subr.mxu0 0.0
          %735 = vmatpush1.msra.mxu0 0.0
          %736 = vmatprep.subr.mxu0 0.0
          %737 = vmatpush1.msra.mxu0 0.0
          %738 = vmatprep.subr.mxu0 0.0
          %739 = vmatpush1.msra.mxu0 0.0
          %740 = vmatprep.subr.mxu0 0.0
          %741 = vmatpush1.msra.mxu0 0.0
          %742 = vmatprep.subr.mxu0 0.0
          %743 = vmatpush1.msra.mxu0 0.0
          %744 = vmatprep.subr.mxu0 0.0
          %745 = vmatpush1.msra.mxu0 0.0
          %746 = vmatprep.subr.mxu0 0.0
          %747 = vmatpush1.msra.mxu0 0.0
          %748 = vmatprep.subr.mxu0 0.0
          %749 = vmatpush1.msra.mxu0 0.0
          %750 = vmatprep.subr.mxu0 0.0
          %751 = vmatpush1.msra.mxu0 0.0
          %752 = vmatprep.subr.mxu0 0.0
          %753 = vmatpush1.msra.mxu0 0.0
          %754 = vmatprep.subr.mxu0 0.0
          %755 = vmatpush1.msra.mxu0 0.0
          %756 = vmatprep.subr.mxu0 0.0
          %757 = vmatpush1.msra.mxu0 0.0
          %758 = vmatprep.subr.mxu0 0.0
          %759 = vmatpush1.msra.mxu0 0.0
          %760 = vmatprep.subr.mxu0 0.0
          %761 = vmatpush1.msra.mxu0 0.0
          %762 = vmatprep.subr.mxu0 0.0
          %763 = vmatpush1.msra.mxu0 0.0
          %764 = vmatprep.subr.mxu0 0.0
          %765 = vmatpush1.msra.mxu0 0.0
          %766 = vmatprep.subr.mxu0 0.0
          %767 = vmatpush1.msra.mxu0 0.0
          %768 = vmatprep.subr.mxu0 0.0
          %769 = vmatpush1.msra.mxu0 0.0
          %770 = vmatprep.subr.mxu0 0.0
          %771 = vmatpush1.msra.mxu0 0.0
          %772 = vmatprep.mubr.f32.mxu0 0.0
          %773 = vmatmul.mubr.f32.gmra.mrb[0].mxu0 %v706
          %v774 = vpop.f32.mrb[0].mxu0
          %v775 = vadd.f32 %v704, %v774
          %v776 = vpop.f32.mrb[0].mxu0
          %777 = vdwg.mxu0
          %778 = vst [vmem:[#allocation10] sm:$0xff] %v775
        $region56: #{tpu_custom_call.1} parent=35 // pred_fallthru
          _
        // Predicated region
        $region57: #{tpu_custom_call.1} parent=35 // pred_check
          %p779 = pneg %p141
        $region58: #{tpu_custom_call.1} parent=35 // pred_check_branch
          %781 = sbr.rel (%p779) target = $region60
        $region59: #{tpu_custom_call.1} parent=35 // pred_region
          %s783 = ssub.s32 128, 128
          %784 = vsyncadd [#allocation6], %s783
          %s785 = smul.addr %s24, 128
          %s786 = scalar_lea.hbm %s4, %s785
          %s788 = sshll.u32 [#allocation10], 4
          %s789 = int_to_ptr.vmem [resolvable:$true] %s788
          %791 = dma.vmem_to_hbm [thread:$0]  %s789, 128, %s786, [#allocation6]
        $region60: #{tpu_custom_call.1} parent=35 // pred_fallthru
          _
        // Predicated region
        $region61: #{tpu_custom_call.1} parent=35 // pred_check
          %p792 = pneg %p141
        $region62: #{tpu_custom_call.1} parent=35 // pred_check_branch
          %794 = sbr.rel (%p792) target = $region64
        $region63: #{tpu_custom_call.1} parent=35 // pred_region
          %795 = dma.done [#allocation6], 128
        $region64: #{tpu_custom_call.1} parent=35 // pred_fallthru
          _
      $region36: #{tpu_custom_call.1} parent=5 // pred_fallthru
        _
      %p796 = scmp.le.s32.totalorder 2, %s15
      // Predicated region
      $region65: #{tpu_custom_call.1} parent=5 // pred_check
        %p797 = pneg %p796
      $region66: #{tpu_custom_call.1} parent=5 // pred_check_branch
        %799 = sbr.rel (%p797) target = $region68
      $region67: #{tpu_custom_call.1} parent=5 // pred_region
        %s800 = ssub.s32 %s15, 2
      $region68: #{tpu_custom_call.1} parent=5 // pred_fallthru
        _
    $region6: #{tpu_custom_call.1} parent=1 // loop_footer
      %s19 = sadd.s32 1, %s15
    $region7: #{tpu_custom_call.1} parent=1 // loop_footer_branch
      %14 = sbr.rel target = $region3
    $region8: #{tpu_custom_call.1} parent=1 // loop_exit
      _
    %801 = vsyncpa [#allocation5], 1
    %s802 = scalar_lea.sflag [#allocation5], 1
    %803 = vsyncpa %s802, 1
    %804 = vsyncpa [#allocation8], 1
    %805 = vsyncpa [#allocation6], 1
    %s806 = scalar_lea.sflag [#allocation6], 1
    %807 = vsyncpa %s806, 1

</llo_original>
